<compile_context>
chip_gen: v6e
topology: v6e:2x2x1
jax: 0.10.0
libtpu: 0.0.40
codegen_flags: <defaults>
</compile_context>

<pallas_src>
import jax
import jax.numpy as jnp
from jax.experimental import pallas as pl
from jax.experimental.pallas import tpu as pltpu


def _mlp_d_kernel(x_ref, wh_ref, bh_ref, wf_ref, bf_ref, o_ref):
    # x_ref : (n*C, TP)          NCW input tile (channels x patches)
    # wh_ref: (L-1, n*C, n*C)    block-diagonal hidden weights (resident)
    # bh_ref: (L-1, n*C, 1)      hidden biases (column, broadcast over lanes)
    # wf_ref: (n, n*C)           block final weights
    # bf_ref: (n, 1)             final bias
    # o_ref : (n, TP)            lane-dense output tile
    h = x_ref[...].astype(jnp.float32)                                   # (n*C, TP)
    n_hidden = wh_ref.shape[0]
    # Static unroll: fine for small layer counts (here L-1 = 3).
    for l in range(n_hidden):
        w = wh_ref[l].astype(jnp.float32)                                # (n*C, n*C)
        h = jnp.dot(w, h, preferred_element_type=jnp.float32) + bh_ref[l]
        h = jnp.maximum(h, 0.0)                                          # ReLU
    wf = wf_ref[...].astype(jnp.float32)                                 # (n, n*C)
    out = jnp.dot(wf, h, preferred_element_type=jnp.float32) + bf_ref[...]
    o_ref[...] = out.astype(o_ref.dtype)                                 # (n, TP)


def mlp_d_forward(x, wh, bh, wf, bf, *, patch_tile=512):
    """x: [n, patches, c]; wh: [L-1, n, C, C] (PyTorch out,in order);
    bh: [L-1, n, C]; wf: [n, C]; bf: [n].  Returns [n, patches]."""
    n, P, C = x.shape
    L1 = wh.shape[0]
    NC = n * C

    # --- wrapper-side packing (layout plumbing, done once by XLA) ------------
    # Input into native NCW layout: x_ncw[i*C + c, p] = x[i, p, c]
    x_ncw = jnp.transpose(x, (0, 2, 1)).reshape(NC, P)
    eye = jnp.eye(n, dtype=wh.dtype)
    # Block-diagonal hidden weights: wh_bd[l, i*C+a, j*C+b] = delta_ij * wh[l,i,a,b]
    wh_bd = jnp.einsum("liab,ij->liajb", wh, eye).reshape(L1, NC, NC)
    bh_col = bh.reshape(L1, NC, 1)
    # Final block weights: wf_bd[i, j*C+c] = delta_ij * wf[i, c]
    wf_bd = (wf[:, None, :] * eye[:, :, None]).reshape(n, NC)
    bf_col = bf.reshape(n, 1)

    # --- patch tiling ---------------------------------------------------------
    if P <= patch_tile:
        tp, P_pad = P, P                      # whole-array block (always legal)
    else:
        tp = patch_tile                       # 128-aligned lane tile
        P_pad = ((P + tp - 1) // tp) * tp
        if P_pad != P:
            x_ncw = jnp.pad(x_ncw, ((0, 0), (0, P_pad - P)))
    grid = (P_pad // tp,)

    out = pl.pallas_call(
        _mlp_d_kernel,
        out_shape=jax.ShapeDtypeStruct((n, P_pad), x.dtype),
        grid_spec=pltpu.PrefetchScalarGridSpec(
            num_scalar_prefetch=0,
            grid=grid,
            in_specs=[
                pl.BlockSpec((NC, tp), lambda j: (0, j)),          # x tile
                pl.BlockSpec((L1, NC, NC), lambda j: (0, 0, 0)),   # weights: resident
                pl.BlockSpec((L1, NC, 1), lambda j: (0, 0, 0)),
                pl.BlockSpec((n, NC), lambda j: (0, 0)),
                pl.BlockSpec((n, 1), lambda j: (0, 0)),
            ],
            out_specs=pl.BlockSpec((n, tp), lambda j: (0, j)),     # lane-dense output
        ),
        compiler_params=pltpu.CompilerParams(
            dimension_semantics=("parallel",),
            vmem_limit_bytes=64 * 1024 * 1024,
        ),
    )(x_ncw, wh_bd, bh_col, wf_bd, bf_col)
    return out[:, :P]


def mlp_d_reference(x, wh, bh, wf, bf):
    """Pure-JAX reference mirroring the PyTorch grouped-conv forward."""
    h = jnp.transpose(x, (0, 2, 1)).astype(jnp.float32)          # (n, C, P) == NCW per group
    for l in range(wh.shape[0]):
        h = jnp.einsum("ndc,ncp->ndp", wh[l], h) + bh[l][:, :, None]
        h = jnp.maximum(h, 0.0)
    out = jnp.einsum("nc,ncp->np", wf, h) + bf[:, None]
    return out                                                    # (n, P)


def init_params(key, in_dim, batch_size, layers):
    """Synthetic weights matching the grouped-Conv1d shapes (out, in ordering)."""
    assert layers > 1
    n_hidden = layers - 1
    k_wh, k_bh, k_wf, k_bf = jax.random.split(key, 4)
    scale = 1.0 / jnp.sqrt(jnp.float32(in_dim))
    wh = jax.random.normal(k_wh, (n_hidden, batch_size, in_dim, in_dim), jnp.float32) * scale
    bh = jax.random.normal(k_bh, (n_hidden, batch_size, in_dim), jnp.float32) * 0.1
    wf = jax.random.normal(k_wf, (batch_size, in_dim), jnp.float32) * scale
    bf = jax.random.normal(k_bf, (batch_size,), jnp.float32) * 0.1
    return wh, bh, wf, bf


if __name__ == "__main__":
    # Shapes consistent with the module: batch_size=2, in_dim=16, patches=8.
    batch_size = 2
    in_dim = 16        # == c (channel dim of the input)
    hidden_dim = 32    # accepted but unused by the PyTorch module's layer construction
    layers = 4
    patches = 8

    key = jax.random.PRNGKey(0)
    k_x, k_p = jax.random.split(key)
    x = jax.random.normal(k_x, (batch_size, patches, in_dim), jnp.float32)
    wh, bh, wf, bf = init_params(k_p, in_dim, batch_size, layers)

    out = mlp_d_forward(x, wh, bh, wf, bf)
    out = jax.block_until_ready(out)

    ref = mlp_d_reference(x, wh, bh, wf, bf)
    assert out.shape == (batch_size, patches)
    assert jnp.allclose(out, ref, atol=1e-5, rtol=1e-5)

    print("KERNEL_OK")
</pallas_src>

<mosaic_0001>
module attributes {stable_mosaic.version = 11 : i64} {
  func.func @_mlp_d_kernel(%arg0: i32, %arg1: memref<32x8xf32, #tpu.memory_space<vmem>>, %arg2: memref<3x32x32xf32, #tpu.memory_space<vmem>>, %arg3: memref<3x32x1xf32, #tpu.memory_space<vmem>>, %arg4: memref<2x32xf32, #tpu.memory_space<vmem>>, %arg5: memref<2x1xf32, #tpu.memory_space<vmem>>, %arg6: memref<2x8xf32, #tpu.memory_space<vmem>>) attributes {dimension_semantics = [#tpu.dimension_semantics<parallel>], iteration_bounds = array<i64: 1>, scalar_prefetch = 0 : i64, scratch_operands = 0 : i64, tpu.core_type = #tpu.core_type<tc>, window_params = [{transform_indices = @transform_0, window_bounds = array<i64: 32, 8>}, {pipeline_mode = #tpu.pipeline_mode<synchronous>, transform_indices = @transform_1, window_bounds = array<i64: 3, 32, 32>}, {pipeline_mode = #tpu.pipeline_mode<synchronous>, transform_indices = @transform_2, window_bounds = array<i64: 3, 32, 1>}, {pipeline_mode = #tpu.pipeline_mode<synchronous>, transform_indices = @transform_3, window_bounds = array<i64: 2, 32>}, {pipeline_mode = #tpu.pipeline_mode<synchronous>, transform_indices = @transform_4, window_bounds = array<i64: 2, 1>}, {transform_indices = @transform_5, window_bounds = array<i64: 2, 8>}]} {
    %c0 = arith.constant 0 : index
    %c0_0 = arith.constant 0 : index
    %0 = vector.load %arg1[%c0, %c0_0] : memref<32x8xf32, #tpu.memory_space<vmem>>, vector<32x8xf32>
    %c0_1 = arith.constant 0 : index
    %c0_2 = arith.constant 0 : index
    %c0_3 = arith.constant 0 : index
    %1 = vector.load %arg2[%c0_1, %c0_2, %c0_3] : memref<3x32x32xf32, #tpu.memory_space<vmem>>, vector<1x32x32xf32>
    %2 = vector.shape_cast %1 : vector<1x32x32xf32> to vector<32x32xf32>
    %cst = arith.constant dense<0.000000e+00> : vector<32x8xf32>
    %3 = tpu.matmul %2, %0, %cst {dimension_numbers = #tpu.dot_dimension_numbers<[1], [0], [0], [1], [0, 0, 1, 1], [], []>} : vector<32x32xf32>, vector<32x8xf32>, vector<32x8xf32> -> vector<32x8xf32>
    %c0_4 = arith.constant 0 : index
    %c0_5 = arith.constant 0 : index
    %c0_6 = arith.constant 0 : index
    %4 = vector.load %arg3[%c0_4, %c0_5, %c0_6] : memref<3x32x1xf32, #tpu.memory_space<vmem>>, vector<1x32x1xf32>
    %5 = vector.shape_cast %4 : vector<1x32x1xf32> to vector<32x1xf32>
    %6 = vector.broadcast %5 : vector<32x1xf32> to vector<32x8xf32>
    %7 = arith.addf %3, %6 : vector<32x8xf32>
    %cst_7 = arith.constant 0.000000e+00 : f32
    %8 = vector.broadcast %cst_7 : f32 to vector<32x8xf32>
    %9 = arith.maximumf %7, %8 : vector<32x8xf32>
    %c1 = arith.constant 1 : index
    %c0_8 = arith.constant 0 : index
    %c0_9 = arith.constant 0 : index
    %10 = vector.load %arg2[%c1, %c0_8, %c0_9] : memref<3x32x32xf32, #tpu.memory_space<vmem>>, vector<1x32x32xf32>
    %11 = vector.shape_cast %10 : vector<1x32x32xf32> to vector<32x32xf32>
    %cst_10 = arith.constant dense<0.000000e+00> : vector<32x8xf32>
    %12 = tpu.matmul %11, %9, %cst_10 {dimension_numbers = #tpu.dot_dimension_numbers<[1], [0], [0], [1], [0, 0, 1, 1], [], []>} : vector<32x32xf32>, vector<32x8xf32>, vector<32x8xf32> -> vector<32x8xf32>
    %c1_11 = arith.constant 1 : index
    %c0_12 = arith.constant 0 : index
    %c0_13 = arith.constant 0 : index
    %13 = vector.load %arg3[%c1_11, %c0_12, %c0_13] : memref<3x32x1xf32, #tpu.memory_space<vmem>>, vector<1x32x1xf32>
    %14 = vector.shape_cast %13 : vector<1x32x1xf32> to vector<32x1xf32>
    %15 = vector.broadcast %14 : vector<32x1xf32> to vector<32x8xf32>
    %16 = arith.addf %12, %15 : vector<32x8xf32>
    %cst_14 = arith.constant 0.000000e+00 : f32
    %17 = vector.broadcast %cst_14 : f32 to vector<32x8xf32>
    %18 = arith.maximumf %16, %17 : vector<32x8xf32>
    %c2 = arith.constant 2 : index
    %c0_15 = arith.constant 0 : index
    %c0_16 = arith.constant 0 : index
    %19 = vector.load %arg2[%c2, %c0_15, %c0_16] : memref<3x32x32xf32, #tpu.memory_space<vmem>>, vector<1x32x32xf32>
    %20 = vector.shape_cast %19 : vector<1x32x32xf32> to vector<32x32xf32>
    %cst_17 = arith.constant dense<0.000000e+00> : vector<32x8xf32>
    %21 = tpu.matmul %20, %18, %cst_17 {dimension_numbers = #tpu.dot_dimension_numbers<[1], [0], [0], [1], [0, 0, 1, 1], [], []>} : vector<32x32xf32>, vector<32x8xf32>, vector<32x8xf32> -> vector<32x8xf32>
    %c2_18 = arith.constant 2 : index
    %c0_19 = arith.constant 0 : index
    %c0_20 = arith.constant 0 : index
    %22 = vector.load %arg3[%c2_18, %c0_19, %c0_20] : memref<3x32x1xf32, #tpu.memory_space<vmem>>, vector<1x32x1xf32>
    %23 = vector.shape_cast %22 : vector<1x32x1xf32> to vector<32x1xf32>
    %24 = vector.broadcast %23 : vector<32x1xf32> to vector<32x8xf32>
    %25 = arith.addf %21, %24 : vector<32x8xf32>
    %cst_21 = arith.constant 0.000000e+00 : f32
    %26 = vector.broadcast %cst_21 : f32 to vector<32x8xf32>
    %27 = arith.maximumf %25, %26 : vector<32x8xf32>
    %c0_22 = arith.constant 0 : index
    %c0_23 = arith.constant 0 : index
    %28 = vector.load %arg4[%c0_22, %c0_23] : memref<2x32xf32, #tpu.memory_space<vmem>>, vector<2x32xf32>
    %cst_24 = arith.constant dense<0.000000e+00> : vector<2x8xf32>
    %29 = tpu.matmul %28, %27, %cst_24 {dimension_numbers = #tpu.dot_dimension_numbers<[1], [0], [0], [1], [0, 0, 1, 1], [], []>} : vector<2x32xf32>, vector<32x8xf32>, vector<2x8xf32> -> vector<2x8xf32>
    %c0_25 = arith.constant 0 : index
    %c0_26 = arith.constant 0 : index
    %30 = vector.load %arg5[%c0_25, %c0_26] : memref<2x1xf32, #tpu.memory_space<vmem>>, vector<2x1xf32>
    %31 = vector.broadcast %30 : vector<2x1xf32> to vector<2x8xf32>
    %32 = arith.addf %29, %31 : vector<2x8xf32>
    %c0_27 = arith.constant 0 : index
    %c0_28 = arith.constant 0 : index
    %33 = vector.load %arg6[%c0_27, %c0_28] : memref<2x8xf32, #tpu.memory_space<vmem>>, vector<2x8xf32>
    tpu.vector_store %arg6[%c0_27, %c0_28], %32 {strides = array<i32>} : memref<2x8xf32, #tpu.memory_space<vmem>>, vector<2x8xf32>,
    return
  }
  func.func @transform_0(%arg0: i32) -> (i32, i32) {
    %c0_i32 = arith.constant 0 : i32
    %c0_i32_0 = arith.constant 0 : i32
    return %c0_i32, %arg0 : i32, i32
  }
  func.func @transform_1(%arg0: i32) -> (i32, i32, i32) {
    %c0_i32 = arith.constant 0 : i32
    %c0_i32_0 = arith.constant 0 : i32
    %c0_i32_1 = arith.constant 0 : i32
    %c0_i32_2 = arith.constant 0 : i32
    return %c0_i32, %c0_i32_0, %c0_i32_1 : i32, i32, i32
  }
  func.func @transform_2(%arg0: i32) -> (i32, i32, i32) {
    %c0_i32 = arith.constant 0 : i32
    %c0_i32_0 = arith.constant 0 : i32
    %c0_i32_1 = arith.constant 0 : i32
    %c0_i32_2 = arith.constant 0 : i32
    return %c0_i32, %c0_i32_0, %c0_i32_1 : i32, i32, i32
  }
  func.func @transform_3(%arg0: i32) -> (i32, i32) {
    %c0_i32 = arith.constant 0 : i32
    %c0_i32_0 = arith.constant 0 : i32
    %c0_i32_1 = arith.constant 0 : i32
    return %c0_i32, %c0_i32_0 : i32, i32
  }
  func.func @transform_4(%arg0: i32) -> (i32, i32) {
    %c0_i32 = arith.constant 0 : i32
    %c0_i32_0 = arith.constant 0 : i32
    %c0_i32_1 = arith.constant 0 : i32
    return %c0_i32, %c0_i32_0 : i32, i32
  }
  func.func @transform_5(%arg0: i32) -> (i32, i32) {
    %c0_i32 = arith.constant 0 : i32
    %c0_i32_0 = arith.constant 0 : i32
    return %c0_i32, %arg0 : i32, i32
  }
}

</mosaic_0001>

<llo_original>
// kernel: tpu_custom_call.1
$region0: #{tpu_custom_call.1}
  #allocation0 [shape = 'u32[]', space=smem, size = 0x4, offset = 0x4, fixed_abs, tag = 'smem constant byte address 0x4 - core index']
  #allocation1 [shape = 'u32[144,128]{1,0:T(1,128)}', space=vmem, size = 0x12000, scoped, tag = 'internal scratch']
  %s0 = inlined_call_operand.vmem [shape: f32[32,8], index: 0, kind: input, shape index: {}]
  %s1 = inlined_call_operand.vmem [shape: f32[3,32,32], index: 1, kind: input, shape index: {}]
  %s2 = inlined_call_operand.vmem [shape: f32[3,32,1], index: 2, kind: input, shape index: {}]
  %s3 = inlined_call_operand.vmem [shape: f32[2,32], index: 3, kind: input, shape index: {}]
  %s4 = inlined_call_operand.vmem [shape: f32[2,1], index: 4, kind: input, shape index: {}]
  %s5 = inlined_call_operand.hbm [shape: f32[2,8], index: 5, kind: output, shape index: {}]
  %s6 = sld [smem:[#allocation0]]
  $region30: #{tpu_custom_call.1} parent=0
    _
  %s8 = ssub.s32 1, %s6
  %s9 = scalar_select 0, %s8, %s6
  $region1: #{tpu_custom_call.1} parent=0
    #allocation2 [shape = 'u8[1024]{0}', space=vmem, size = 0x400, scoped, tag = 'output window, operand 0, single buffered']
    #allocation3 [shape = 's32[1]{0}', space=sflag, size = 0x4, scoped, tag = 'scoped memory for tpu_custom_call.1']
    %10 = vsyncpa [#allocation3], 0
    // Predicated region
    $region2: #{tpu_custom_call.1} parent=1 // pred_check
      _
    $region3: #{tpu_custom_call.1} parent=1 // pred_check_branch
      %12 = sbr.rel (0) target = $region5
    $region4: #{tpu_custom_call.1} parent=1 // pred_region
      _
    $region5: #{tpu_custom_call.1} parent=1 // pred_fallthru
      _
    // Predicated region
    $region6: #{tpu_custom_call.1} parent=1 // pred_check
      _
    $region7: #{tpu_custom_call.1} parent=1 // pred_check_branch
      %14 = sbr.rel (0) target = $region9
    $region8: #{tpu_custom_call.1} parent=1 // pred_region
      _
    $region9: #{tpu_custom_call.1} parent=1 // pred_fallthru
      _
    // Predicated region
    $region10: #{tpu_custom_call.1} parent=1 // pred_check
      _
    $region11: #{tpu_custom_call.1} parent=1 // pred_check_branch
      %16 = sbr.rel (0) target = $region13
    $region12: #{tpu_custom_call.1} parent=1 // pred_region
      _
    $region13: #{tpu_custom_call.1} parent=1 // pred_fallthru
      _
    // Predicated region
    $region14: #{tpu_custom_call.1} parent=1 // pred_check
      _
    $region15: #{tpu_custom_call.1} parent=1 // pred_check_branch
      %18 = sbr.rel (0) target = $region17
    $region16: #{tpu_custom_call.1} parent=1 // pred_region
      _
    $region17: #{tpu_custom_call.1} parent=1 // pred_fallthru
      _
    // Predicated region
    $region18: #{tpu_custom_call.1} parent=1 // pred_check
      _
    $region19: #{tpu_custom_call.1} parent=1 // pred_check_branch
      %20 = sbr.rel (0) target = $region21
    $region20: #{tpu_custom_call.1} parent=1 // pred_region
      _
    $region21: #{tpu_custom_call.1} parent=1 // pred_fallthru
      _
    %v21 = vld [vmem:[%s0] sm:$0xff]
    %v22 = vld [vmem:[%s0 + $0x8] sm:$0xff]
    %v23 = vld [vmem:[%s0 + $0x10] sm:$0xff]
    %v24 = vld [vmem:[%s0 + $0x18] sm:$0xff]
    %v25 = vld [vmem:[%s1] sm:$0xff]
    %v26 = vld [vmem:[%s1 + $0x8] sm:$0xff]
    %v27 = vld [vmem:[%s1 + $0x10] sm:$0xff]
    %v28 = vld [vmem:[%s1 + $0x18] sm:$0xff]
    %v29 = vld [vmem:[%s2] sm:$0xff]
    %v30 = vld [vmem:[%s2 + $0x8] sm:$0xff]
    %v31 = vld [vmem:[%s2 + $0x10] sm:$0xff]
    %v32 = vld [vmem:[%s2 + $0x18] sm:$0xff]
    %34 = vset.pattern.permute.xlu0 0
    %35 = vperm.xlu0 %34, %v29
    %v36 = vpop.permute.xlu0 %35
    %39 = vset.pattern.permute.xlu0 0
    %40 = vperm.xlu0 %39, %v30
    %v41 = vpop.permute.xlu0 %40
    %44 = vset.pattern.permute.xlu0 0
    %45 = vperm.xlu0 %44, %v31
    %v46 = vpop.permute.xlu0 %45
    %49 = vset.pattern.permute.xlu0 0
    %50 = vperm.xlu0 %49, %v32
    %v51 = vpop.permute.xlu0 %50
    %vm53 = vcmask 261120
    %v55 = vsel %vm53, %v25, 0
    %v58 = vsel %vm53, %v26, 0
    %v61 = vsel %vm53, %v27, 0
    %v64 = vsel %vm53, %v28, 0
    %66 = vmatprep.subr.mxu0 0.0
    %67 = vmatpush1.msra.mxu0 0.0
    %68 = vmatprep.subr.mxu0 0.0
    %69 = vmatpush1.msra.mxu0 0.0
    %70 = vmatprep.subr.mxu0 0.0
    %71 = vmatpush1.msra.mxu0 0.0
    %72 = vmatprep.subr.mxu0 0.0
    %73 = vmatpush1.msra.mxu0 0.0
    %74 = vmatprep.subr.mxu0 0.0
    %75 = vmatpush1.msra.mxu0 0.0
    %76 = vmatprep.subr.mxu0 0.0
    %77 = vmatpush1.msra.mxu0 0.0
    %78 = vmatprep.subr.mxu0 0.0
    %79 = vmatpush1.msra.mxu0 0.0
    %80 = vmatprep.subr.mxu0 0.0
    %81 = vmatpush1.msra.mxu0 0.0
    %82 = vmatprep.subr.mxu0 0.0
    %83 = vmatpush1.msra.mxu0 0.0
    %84 = vmatprep.subr.mxu0 0.0
    %85 = vmatpush1.msra.mxu0 0.0
    %86 = vmatprep.subr.mxu0 0.0
    %87 = vmatpush1.msra.mxu0 0.0
    %88 = vmatprep.subr.mxu0 0.0
    %89 = vmatpush1.msra.mxu0 0.0
    %90 = vmatprep.subr.mxu0 0.0
    %91 = vmatpush1.msra.mxu0 %v24
    %92 = vmatprep.subr.mxu0 0.0
    %93 = vmatpush1.msra.mxu0 %v23
    %94 = vmatprep.subr.mxu0 0.0
    %95 = vmatpush1.msra.mxu0 %v22
    %96 = vmatprep.subr.mxu0 0.0
    %97 = vmatpush1.msra.mxu0 %v21
    %98 = vmatprep.subr.mxu0 0.0
    %99 = vmatpush2.msra.mxu0 0.0
    %100 = vmatprep.subr.mxu0 0.0
    %101 = vmatpush2.msra.mxu0 0.0
    %102 = vmatprep.subr.mxu0 0.0
    %103 = vmatpush2.msra.mxu0 0.0
    %104 = vmatprep.subr.mxu0 0.0
    %105 = vmatpush2.msra.mxu0 0.0
    %106 = vmatprep.subr.mxu0 0.0
    %107 = vmatpush2.msra.mxu0 0.0
    %108 = vmatprep.subr.mxu0 0.0
    %109 = vmatpush2.msra.mxu0 0.0
    %110 = vmatprep.subr.mxu0 0.0
    %111 = vmatpush2.msra.mxu0 0.0
    %112 = vmatprep.subr.mxu0 0.0
    %113 = vmatpush2.msra.mxu0 0.0
    %114 = vmatprep.subr.mxu0 0.0
    %115 = vmatpush2.msra.mxu0 0.0
    %116 = vmatprep.subr.mxu0 0.0
    %117 = vmatpush2.msra.mxu0 0.0
    %118 = vmatprep.subr.mxu0 0.0
    %119 = vmatpush2.msra.mxu0 0.0
    %120 = vmatprep.subr.mxu0 0.0
    %121 = vmatpush2.msra.mxu0 0.0
    %122 = vmatprep.subr.mxu0 0.0
    %123 = vmatpush2.msra.mxu0 0.0
    %124 = vmatprep.subr.mxu0 0.0
    %125 = vmatpush2.msra.mxu0 0.0
    %126 = vmatprep.subr.mxu0 0.0
    %127 = vmatpush2.msra.mxu0 0.0
    %128 = vmatprep.subr.mxu0 0.0
    %129 = vmatpush2.msra.mxu0 0.0
    %130 = vmatprep.mubr.f32.mxu0 0.0
    %131 = vmatmul.mubr.f32.gmra.mxu0 %v55
    %v132 = vpop.f32.mrf.mxu0
    %v133 = vadd.f32 %v36, %v132
    %v134 = vpop.f32.mrf.mxu0
    %135 = vmatprep.mubr.f32.mxu0 0.0
    %136 = vmatmul.mubr.f32.gmra.mxu0 %v58
    %v137 = vpop.f32.mrf.mxu0
    %v138 = vadd.f32 %v41, %v137
    %v139 = vpop.f32.mrf.mxu0
    %140 = vmatprep.mubr.f32.mxu0 0.0
    %141 = vmatmul.mubr.f32.gmra.mxu0 %v61
    %v142 = vpop.f32.mrf.mxu0
    %v143 = vadd.f32 %v46, %v142
    %v144 = vpop.f32.mrf.mxu0
    %145 = vmatprep.mubr.f32.mxu0 0.0
    %146 = vmatmul.mubr.f32.gmra.mxu0 %v64
    %v147 = vpop.f32.mrf.mxu0
    %v148 = vadd.f32 %v51, %v147
    %v149 = vpop.f32.mrf.mxu0
    %150 = vdwg.mxu0
    %v151 = vmax.f32 %v133, 0.0
    %v152 = vmax.f32 %v138, 0.0
    %v153 = vmax.f32 %v143, 0.0
    %v154 = vmax.f32 %v148, 0.0
    %s155 = scalar_lea.vmem %s1, 32
    %v156 = vld [vmem:[%s155] sm:$0xff]
    %v157 = vld [vmem:[%s155 + $0x8] sm:$0xff]
    %v158 = vld [vmem:[%s155 + $0x10] sm:$0xff]
    %v159 = vld [vmem:[%s155 + $0x18] sm:$0xff]
    %s160 = scalar_lea.vmem %s2, 32
    %v161 = vld [vmem:[%s160] sm:$0xff]
    %v162 = vld [vmem:[%s160 + $0x8] sm:$0xff]
    %v163 = vld [vmem:[%s160 + $0x10] sm:$0xff]
    %v164 = vld [vmem:[%s160 + $0x18] sm:$0xff]
    %166 = vset.pattern.permute.xlu0 0
    %167 = vperm.xlu0 %166, %v161
    %v168 = vpop.permute.xlu0 %167
    %171 = vset.pattern.permute.xlu0 0
    %172 = vperm.xlu0 %171, %v162
    %v173 = vpop.permute.xlu0 %172
    %176 = vset.pattern.permute.xlu0 0
    %177 = vperm.xlu0 %176, %v163
    %v178 = vpop.permute.xlu0 %177
    %181 = vset.pattern.permute.xlu0 0
    %182 = vperm.xlu0 %181, %v164
    %v183 = vpop.permute.xlu0 %182
    %v186 = vsel %vm53, %v156, 0
    %v189 = vsel %vm53, %v157, 0
    %v192 = vsel %vm53, %v158, 0
    %v195 = vsel %vm53, %v159, 0
    %197 = vmatprep.subr.mxu0 0.0
    %198 = vmatpush1.msra.mxu0 0.0
    %199 = vmatprep.subr.mxu0 0.0
    %200 = vmatpush1.msra.mxu0 0.0
    %201 = vmatprep.subr.mxu0 0.0
    %202 = vmatpush1.msra.mxu0 0.0
    %203 = vmatprep.subr.mxu0 0.0
    %204 = vmatpush1.msra.mxu0 0.0
    %205 = vmatprep.subr.mxu0 0.0
    %206 = vmatpush1.msra.mxu0 0.0
    %207 = vmatprep.subr.mxu0 0.0
    %208 = vmatpush1.msra.mxu0 0.0
    %209 = vmatprep.subr.mxu0 0.0
    %210 = vmatpush1.msra.mxu0 0.0
    %211 = vmatprep.subr.mxu0 0.0
    %212 = vmatpush1.msra.mxu0 0.0
    %213 = vmatprep.subr.mxu0 0.0
    %214 = vmatpush1.msra.mxu0 0.0
    %215 = vmatprep.subr.mxu0 0.0
    %216 = vmatpush1.msra.mxu0 0.0
    %217 = vmatprep.subr.mxu0 0.0
    %218 = vmatpush1.msra.mxu0 0.0
    %219 = vmatprep.subr.mxu0 0.0
    %220 = vmatpush1.msra.mxu0 0.0
    %221 = vmatprep.subr.mxu0 0.0
    %222 = vmatpush1.msra.mxu0 %v154
    %223 = vmatprep.subr.mxu0 0.0
    %224 = vmatpush1.msra.mxu0 %v153
    %225 = vmatprep.subr.mxu0 0.0
    %226 = vmatpush1.msra.mxu0 %v152
    %227 = vmatprep.subr.mxu0 0.0
    %228 = vmatpush1.msra.mxu0 %v151
    %229 = vmatprep.subr.mxu0 0.0
    %230 = vmatpush2.msra.mxu0 0.0
    %231 = vmatprep.subr.mxu0 0.0
    %232 = vmatpush2.msra.mxu0 0.0
    %233 = vmatprep.subr.mxu0 0.0
    %234 = vmatpush2.msra.mxu0 0.0
    %235 = vmatprep.subr.mxu0 0.0
    %236 = vmatpush2.msra.mxu0 0.0
    %237 = vmatprep.subr.mxu0 0.0
    %238 = vmatpush2.msra.mxu0 0.0
    %239 = vmatprep.subr.mxu0 0.0
    %240 = vmatpush2.msra.mxu0 0.0
    %241 = vmatprep.subr.mxu0 0.0
    %242 = vmatpush2.msra.mxu0 0.0
    %243 = vmatprep.subr.mxu0 0.0
    %244 = vmatpush2.msra.mxu0 0.0
    %245 = vmatprep.subr.mxu0 0.0
    %246 = vmatpush2.msra.mxu0 0.0
    %247 = vmatprep.subr.mxu0 0.0
    %248 = vmatpush2.msra.mxu0 0.0
    %249 = vmatprep.subr.mxu0 0.0
    %250 = vmatpush2.msra.mxu0 0.0
    %251 = vmatprep.subr.mxu0 0.0
    %252 = vmatpush2.msra.mxu0 0.0
    %253 = vmatprep.subr.mxu0 0.0
    %254 = vmatpush2.msra.mxu0 0.0
    %255 = vmatprep.subr.mxu0 0.0
    %256 = vmatpush2.msra.mxu0 0.0
    %257 = vmatprep.subr.mxu0 0.0
    %258 = vmatpush2.msra.mxu0 0.0
    %259 = vmatprep.subr.mxu0 0.0
    %260 = vmatpush2.msra.mxu0 0.0
    %261 = vmatprep.mubr.f32.mxu0 0.0
    %262 = vmatmul.mubr.f32.gmra.mxu0 %v186
    %v263 = vpop.f32.mrf.mxu0
    %v264 = vadd.f32 %v168, %v263
    %v265 = vpop.f32.mrf.mxu0
    %266 = vmatprep.mubr.f32.mxu0 0.0
    %267 = vmatmul.mubr.f32.gmra.mxu0 %v189
    %v268 = vpop.f32.mrf.mxu0
    %v269 = vadd.f32 %v173, %v268
    %v270 = vpop.f32.mrf.mxu0
    %271 = vmatprep.mubr.f32.mxu0 0.0
    %272 = vmatmul.mubr.f32.gmra.mxu0 %v192
    %v273 = vpop.f32.mrf.mxu0
    %v274 = vadd.f32 %v178, %v273
    %v275 = vpop.f32.mrf.mxu0
    %276 = vmatprep.mubr.f32.mxu0 0.0
    %277 = vmatmul.mubr.f32.gmra.mxu0 %v195
    %v278 = vpop.f32.mrf.mxu0
    %v279 = vadd.f32 %v183, %v278
    %v280 = vpop.f32.mrf.mxu0
    %281 = vdwg.mxu0
    %v282 = vmax.f32 %v264, 0.0
    %v283 = vmax.f32 %v269, 0.0
    %v284 = vmax.f32 %v274, 0.0
    %v285 = vmax.f32 %v279, 0.0
    %s286 = scalar_lea.vmem %s1, 64
    %v287 = vld [vmem:[%s286] sm:$0xff]
    %v288 = vld [vmem:[%s286 + $0x8] sm:$0xff]
    %v289 = vld [vmem:[%s286 + $0x10] sm:$0xff]
    %v290 = vld [vmem:[%s286 + $0x18] sm:$0xff]
    %s291 = scalar_lea.vmem %s2, 64
    %v292 = vld [vmem:[%s291] sm:$0xff]
    %v293 = vld [vmem:[%s291 + $0x8] sm:$0xff]
    %v294 = vld [vmem:[%s291 + $0x10] sm:$0xff]
    %v295 = vld [vmem:[%s291 + $0x18] sm:$0xff]
    %297 = vset.pattern.permute.xlu0 0
    %298 = vperm.xlu0 %297, %v292
    %v299 = vpop.permute.xlu0 %298
    %302 = vset.pattern.permute.xlu0 0
    %303 = vperm.xlu0 %302, %v293
    %v304 = vpop.permute.xlu0 %303
    %307 = vset.pattern.permute.xlu0 0
    %308 = vperm.xlu0 %307, %v294
    %v309 = vpop.permute.xlu0 %308
    %312 = vset.pattern.permute.xlu0 0
    %313 = vperm.xlu0 %312, %v295
    %v314 = vpop.permute.xlu0 %313
    %v317 = vsel %vm53, %v287, 0
    %v320 = vsel %vm53, %v288, 0
    %v323 = vsel %vm53, %v289, 0
    %v326 = vsel %vm53, %v290, 0
    %328 = vmatprep.subr.mxu0 0.0
    %329 = vmatpush1.msra.mxu0 0.0
    %330 = vmatprep.subr.mxu0 0.0
    %331 = vmatpush1.msra.mxu0 0.0
    %332 = vmatprep.subr.mxu0 0.0
    %333 = vmatpush1.msra.mxu0 0.0
    %334 = vmatprep.subr.mxu0 0.0
    %335 = vmatpush1.msra.mxu0 0.0
    %336 = vmatprep.subr.mxu0 0.0
    %337 = vmatpush1.msra.mxu0 0.0
    %338 = vmatprep.subr.mxu0 0.0
    %339 = vmatpush1.msra.mxu0 0.0
    %340 = vmatprep.subr.mxu0 0.0
    %341 = vmatpush1.msra.mxu0 0.0
    %342 = vmatprep.subr.mxu0 0.0
    %343 = vmatpush1.msra.mxu0 0.0
    %344 = vmatprep.subr.mxu0 0.0
    %345 = vmatpush1.msra.mxu0 0.0
    %346 = vmatprep.subr.mxu0 0.0
    %347 = vmatpush1.msra.mxu0 0.0
    %348 = vmatprep.subr.mxu0 0.0
    %349 = vmatpush1.msra.mxu0 0.0
    %350 = vmatprep.subr.mxu0 0.0
    %351 = vmatpush1.msra.mxu0 0.0
    %352 = vmatprep.subr.mxu0 0.0
    %353 = vmatpush1.msra.mxu0 %v285
    %354 = vmatprep.subr.mxu0 0.0
    %355 = vmatpush1.msra.mxu0 %v284
    %356 = vmatprep.subr.mxu0 0.0
    %357 = vmatpush1.msra.mxu0 %v283
    %358 = vmatprep.subr.mxu0 0.0
    %359 = vmatpush1.msra.mxu0 %v282
    %360 = vmatprep.subr.mxu0 0.0
    %361 = vmatpush2.msra.mxu0 0.0
    %362 = vmatprep.subr.mxu0 0.0
    %363 = vmatpush2.msra.mxu0 0.0
    %364 = vmatprep.subr.mxu0 0.0
    %365 = vmatpush2.msra.mxu0 0.0
    %366 = vmatprep.subr.mxu0 0.0
    %367 = vmatpush2.msra.mxu0 0.0
    %368 = vmatprep.subr.mxu0 0.0
    %369 = vmatpush2.msra.mxu0 0.0
    %370 = vmatprep.subr.mxu0 0.0
    %371 = vmatpush2.msra.mxu0 0.0
    %372 = vmatprep.subr.mxu0 0.0
    %373 = vmatpush2.msra.mxu0 0.0
    %374 = vmatprep.subr.mxu0 0.0
    %375 = vmatpush2.msra.mxu0 0.0
    %376 = vmatprep.subr.mxu0 0.0
    %377 = vmatpush2.msra.mxu0 0.0
    %378 = vmatprep.subr.mxu0 0.0
    %379 = vmatpush2.msra.mxu0 0.0
    %380 = vmatprep.subr.mxu0 0.0
    %381 = vmatpush2.msra.mxu0 0.0
    %382 = vmatprep.subr.mxu0 0.0
    %383 = vmatpush2.msra.mxu0 0.0
    %384 = vmatprep.subr.mxu0 0.0
    %385 = vmatpush2.msra.mxu0 0.0
    %386 = vmatprep.subr.mxu0 0.0
    %387 = vmatpush2.msra.mxu0 0.0
    %388 = vmatprep.subr.mxu0 0.0
    %389 = vmatpush2.msra.mxu0 0.0
    %390 = vmatprep.subr.mxu0 0.0
    %391 = vmatpush2.msra.mxu0 0.0
    %392 = vmatprep.mubr.f32.mxu0 0.0
    %393 = vmatmul.mubr.f32.gmra.mxu0 %v317
    %v394 = vpop.f32.mrf.mxu0
    %v395 = vadd.f32 %v299, %v394
    %v396 = vpop.f32.mrf.mxu0
    %397 = vmatprep.mubr.f32.mxu0 0.0
    %398 = vmatmul.mubr.f32.gmra.mxu0 %v320
    %v399 = vpop.f32.mrf.mxu0
    %v400 = vadd.f32 %v304, %v399
    %v401 = vpop.f32.mrf.mxu0
    %402 = vmatprep.mubr.f32.mxu0 0.0
    %403 = vmatmul.mubr.f32.gmra.mxu0 %v323
    %v404 = vpop.f32.mrf.mxu0
    %v405 = vadd.f32 %v309, %v404
    %v406 = vpop.f32.mrf.mxu0
    %407 = vmatprep.mubr.f32.mxu0 0.0
    %408 = vmatmul.mubr.f32.gmra.mxu0 %v326
    %v409 = vpop.f32.mrf.mxu0
    %v410 = vadd.f32 %v314, %v409
    %v411 = vpop.f32.mrf.mxu0
    %412 = vdwg.mxu0
    %v413 = vmax.f32 %v395, 0.0
    %v414 = vmax.f32 %v400, 0.0
    %v415 = vmax.f32 %v405, 0.0
    %v416 = vmax.f32 %v410, 0.0
    %v417 = vld [vmem:[%s3] sm:$0x3]
    %v418 = vld [vmem:[%s4] sm:$0x3]
    %420 = vset.pattern.permute.xlu0 0
    %421 = vperm.xlu0 %420, %v418
    %v422 = vpop.permute.xlu0 %421
    %v425 = vsel %vm53, %v417, 0
    %427 = vmatprep.subr.mxu0 0.0
    %428 = vmatpush1.msra.mxu0 0.0
    %429 = vmatprep.subr.mxu0 0.0
    %430 = vmatpush1.msra.mxu0 0.0
    %431 = vmatprep.subr.mxu0 0.0
    %432 = vmatpush1.msra.mxu0 0.0
    %433 = vmatprep.subr.mxu0 0.0
    %434 = vmatpush1.msra.mxu0 0.0
    %435 = vmatprep.subr.mxu0 0.0
    %436 = vmatpush1.msra.mxu0 0.0
    %437 = vmatprep.subr.mxu0 0.0
    %438 = vmatpush1.msra.mxu0 0.0
    %439 = vmatprep.subr.mxu0 0.0
    %440 = vmatpush1.msra.mxu0 0.0
    %441 = vmatprep.subr.mxu0 0.0
    %442 = vmatpush1.msra.mxu0 0.0
    %443 = vmatprep.subr.mxu0 0.0
    %444 = vmatpush1.msra.mxu0 0.0
    %445 = vmatprep.subr.mxu0 0.0
    %446 = vmatpush1.msra.mxu0 0.0
    %447 = vmatprep.subr.mxu0 0.0
    %448 = vmatpush1.msra.mxu0 0.0
    %449 = vmatprep.subr.mxu0 0.0
    %450 = vmatpush1.msra.mxu0 0.0
    %451 = vmatprep.subr.mxu0 0.0
    %452 = vmatpush1.msra.mxu0 %v416
    %453 = vmatprep.subr.mxu0 0.0
    %454 = vmatpush1.msra.mxu0 %v415
    %455 = vmatprep.subr.mxu0 0.0
    %456 = vmatpush1.msra.mxu0 %v414
    %457 = vmatprep.subr.mxu0 0.0
    %458 = vmatpush1.msra.mxu0 %v413
    %459 = vmatprep.subr.mxu0 0.0
    %460 = vmatpush2.msra.mxu0 0.0
    %461 = vmatprep.subr.mxu0 0.0
    %462 = vmatpush2.msra.mxu0 0.0
    %463 = vmatprep.subr.mxu0 0.0
    %464 = vmatpush2.msra.mxu0 0.0
    %465 = vmatprep.subr.mxu0 0.0
    %466 = vmatpush2.msra.mxu0 0.0
    %467 = vmatprep.subr.mxu0 0.0
    %468 = vmatpush2.msra.mxu0 0.0
    %469 = vmatprep.subr.mxu0 0.0
    %470 = vmatpush2.msra.mxu0 0.0
    %471 = vmatprep.subr.mxu0 0.0
    %472 = vmatpush2.msra.mxu0 0.0
    %473 = vmatprep.subr.mxu0 0.0
    %474 = vmatpush2.msra.mxu0 0.0
    %475 = vmatprep.subr.mxu0 0.0
    %476 = vmatpush2.msra.mxu0 0.0
    %477 = vmatprep.subr.mxu0 0.0
    %478 = vmatpush2.msra.mxu0 0.0
    %479 = vmatprep.subr.mxu0 0.0
    %480 = vmatpush2.msra.mxu0 0.0
    %481 = vmatprep.subr.mxu0 0.0
    %482 = vmatpush2.msra.mxu0 0.0
    %483 = vmatprep.subr.mxu0 0.0
    %484 = vmatpush2.msra.mxu0 0.0
    %485 = vmatprep.subr.mxu0 0.0
    %486 = vmatpush2.msra.mxu0 0.0
    %487 = vmatprep.subr.mxu0 0.0
    %488 = vmatpush2.msra.mxu0 0.0
    %489 = vmatprep.subr.mxu0 0.0
    %490 = vmatpush2.msra.mxu0 0.0
    %491 = vmatprep.mubr.f32.mxu0 0.0
    %492 = vmatmul.mubr.f32.gmra.mxu0 %v425
    %v493 = vpop.f32.mrf.mxu0
    %v494 = vadd.f32 %v422, %v493
    %v495 = vpop.f32.mrf.mxu0
    %496 = vdwg.mxu0
    %vm497 = vcmask 58368
    %498 = vst.msk [vmem:[#allocation2] sm:$0x3] %vm497, %v494
    // Predicated region
    $region22: #{tpu_custom_call.1} parent=1 // pred_check
      _
    $region23: #{tpu_custom_call.1} parent=1 // pred_check_branch
      %500 = sbr.rel (0) target = $region25
    $region24: #{tpu_custom_call.1} parent=1 // pred_region
      %s502 = ssub.s32 32, 32
      %503 = vsyncadd [#allocation3], %s502
      %s505 = sshll.u32 [#allocation2], 4
      %s506 = int_to_ptr.vmem [resolvable:$true] %s505
      %508 = dma.vmem_to_hbm [thread:$0]  %s506, 32, %s5, [#allocation3]
    $region25: #{tpu_custom_call.1} parent=1 // pred_fallthru
      _
    // Predicated region
    $region26: #{tpu_custom_call.1} parent=1 // pred_check
      _
    $region27: #{tpu_custom_call.1} parent=1 // pred_check_branch
      %510 = sbr.rel (0) target = $region29
    $region28: #{tpu_custom_call.1} parent=1 // pred_region
      %511 = dma.done [#allocation3], 32
    $region29: #{tpu_custom_call.1} parent=1 // pred_fallthru
      _
    %512 = vsyncpa [#allocation3], 1

</llo_original>
